<compile_context>
chip_gen: v6e
topology: v6e:2x2x1
jax: 0.10.0
libtpu: 0.0.40
codegen_flags: <defaults>
</compile_context>

<pallas_src>
import functools

import jax
import jax.numpy as jnp
from jax import lax
from jax.experimental import pallas as pl
from jax.experimental.pallas import tpu as pltpu


# ----------------------------- Pallas kernels ------------------------------

def _pe_add_kernel(x_ref, pe_ref, o_ref):
    # x_ref: (TS, B, D); pe_ref: (TS, D)  -> broadcast-add over the batch axis.
    pe_b = pe_ref[...][:, None, :].astype(x_ref.dtype)
    o_ref[...] = (x_ref[...] + pe_b).astype(o_ref.dtype)


def _pe_add_dropout_kernel(seed_ref, x_ref, pe_ref, o_ref, *, p):
    # Training-mode forward: (x + pe) followed by inverted dropout (keep prob 1-p).
    ts, b, d = x_ref.shape
    pe_b = pe_ref[...][:, None, :].astype(x_ref.dtype)
    y = x_ref[...] + pe_b

    # Counter-based hash PRNG: distinct per element, per grid tile, per seed.
    r = lax.broadcasted_iota(jnp.int32, (ts, b, d), 0)
    bb = lax.broadcasted_iota(jnp.int32, (ts, b, d), 1)
    dd = lax.broadcasted_iota(jnp.int32, (ts, b, d), 2)
    base = pl.program_id(0) * (ts * b * d)
    idx = (base + r * (b * d) + bb * d + dd).astype(jnp.uint32)

    h = idx * jnp.uint32(0x9E3779B1)
    h = h ^ (seed_ref[0].astype(jnp.uint32) * jnp.uint32(0x85EBCA77))
    # murmur3 finalizer (32-bit integer ops only -> VPU)
    h = h ^ (h >> 16)
    h = h * jnp.uint32(0x85EBCA6B)
    h = h ^ (h >> 13)
    h = h * jnp.uint32(0xC2B2AE35)
    h = h ^ (h >> 16)

    # Integer-domain keep decision: P(h < threshold) ~= p  =>  keep iff h >= threshold.
    threshold = jnp.uint32(min(int(round(p * 2.0**32)), 2**32 - 1))
    keep = h >= threshold

    scale = jnp.asarray(1.0 / (1.0 - p), dtype=y.dtype)
    o_ref[...] = jnp.where(keep, y * scale, jnp.zeros_like(y)).astype(o_ref.dtype)


# ------------------------------ Wrapper ------------------------------------

def _pick_tile_rows(S, B, D, itemsize, target_bytes=2 * 1024 * 1024):
    """Largest multiple-of-8 row count whose x/out tile is ~target_bytes."""
    rows = max(1, target_bytes // max(1, B * D * itemsize))
    ts = max(8, (rows // 8) * 8)
    s_rounded = ((S + 7) // 8) * 8        # no need to exceed the (rounded) seq len
    return min(ts, s_rounded)


def learnable_positional_encoding(x, pe, *, dropout_p=0.1, training=False, seed=0):
    """x: [S, B, D]; pe: [max_len, 1, D]. Returns [S, B, D]."""
    S, B, D = x.shape
    max_len = pe.shape[0]
    assert pe.shape == (max_len, 1, D)
    assert S <= max_len

    # Squeeze the singleton batch axis of pe (free reshape, same bytes in HBM);
    # keeps pe's VMEM blocks dense instead of one (1, D) row per (8,128) tile.
    pe2 = pe.reshape(max_len, D)

    ts = _pick_tile_rows(S, B, D, jnp.dtype(x.dtype).itemsize)
    grid = (pl.cdiv(S, ts),)

    x_spec = pl.BlockSpec((ts, B, D), lambda i: (i, 0, 0))
    pe_spec = pl.BlockSpec((ts, D), lambda i: (i, 0))     # indexes the full table
    o_spec = pl.BlockSpec((ts, B, D), lambda i: (i, 0, 0))
    out_shape = jax.ShapeDtypeStruct((S, B, D), x.dtype)
    cparams = pltpu.CompilerParams(dimension_semantics=("parallel",))

    if (not training) or dropout_p == 0.0:
        return pl.pallas_call(
            _pe_add_kernel,
            out_shape=out_shape,
            grid=grid,
            in_specs=[x_spec, pe_spec],
            out_specs=o_spec,
            input_output_aliases={0: 0},       # donate x's buffer to the output
            compiler_params=cparams,
        )(x, pe2)

    seed_arr = jnp.asarray([seed], dtype=jnp.int32)
    kernel = functools.partial(_pe_add_dropout_kernel, p=float(dropout_p))
    return pl.pallas_call(
        kernel,
        out_shape=out_shape,
        grid=grid,
        in_specs=[
            pl.BlockSpec(memory_space=pltpu.MemorySpace.SMEM),  # seed scalar
            x_spec,
            pe_spec,
        ],
        out_specs=o_spec,
        input_output_aliases={1: 0},           # x (input index 1) -> output 0
        compiler_params=cparams,
    )(seed_arr, x, pe2)


# ------------------------------- Main --------------------------------------

if __name__ == "__main__":
    d_model = 32
    max_len = 40
    seq_len = 8
    batch = 2

    key = jax.random.PRNGKey(0)
    k_x, k_pe = jax.random.split(key)

    # Parameter init mirroring nn.init.uniform_(pe, -0.02, 0.02)
    pe = jax.random.uniform(
        k_pe, (max_len, 1, d_model), dtype=jnp.float32, minval=-0.02, maxval=0.02
    )
    x = jax.random.normal(k_x, (seq_len, batch, d_model), dtype=jnp.float32)

    ref = x + pe[:seq_len]

    # Eval-mode forward (dropout is identity), matching module.eval().
    out = learnable_positional_encoding(x, pe, dropout_p=0.1, training=False)
    out = jax.block_until_ready(out)
    assert out.shape == (seq_len, batch, d_model)
    assert jnp.allclose(out, ref, atol=1e-6), "eval-mode mismatch vs reference"

    # Training-mode forward (inverted dropout): dropped elements are exactly 0,
    # kept elements equal (x + pe) / (1 - p).
    p = 0.1
    out_train = learnable_positional_encoding(
        x, pe, dropout_p=p, training=True, seed=1234
    )
    out_train = jax.block_until_ready(out_train)
    assert out_train.shape == (seq_len, batch, d_model)
    kept = out_train != 0
    scaled = ref / (1.0 - p)
    assert jnp.allclose(jnp.where(kept, out_train, scaled), scaled, atol=1e-5), (
        "train-mode kept values mismatch vs (x+pe)/(1-p)"
    )

    print("KERNEL_OK")
</pallas_src>

<mosaic_0001>
module attributes {stable_mosaic.version = 11 : i64} {
  func.func @_pe_add_kernel(%arg0: i32, %arg1: memref<8x2x32xf32, #tpu.memory_space<vmem>>, %arg2: memref<8x32xf32, #tpu.memory_space<vmem>>, %arg3: memref<8x2x32xf32, #tpu.memory_space<vmem>>) attributes {dimension_semantics = [#tpu.dimension_semantics<parallel>], iteration_bounds = array<i64: 1>, scalar_prefetch = 0 : i64, scratch_operands = 0 : i64, tpu.core_type = #tpu.core_type<tc>, window_params = [{transform_indices = @transform_0, window_bounds = array<i64: 8, 2, 32>}, {transform_indices = @transform_1, window_bounds = array<i64: 8, 32>}, {transform_indices = @transform_2, window_bounds = array<i64: 8, 2, 32>}]} {
    %c0 = arith.constant 0 : index
    %c0_0 = arith.constant 0 : index
    %0 = vector.load %arg2[%c0, %c0_0] : memref<8x32xf32, #tpu.memory_space<vmem>>, vector<8x32xf32>
    %1 = vector.shape_cast %0 : vector<8x32xf32> to vector<8x1x32xf32>
    %c0_1 = arith.constant 0 : index
    %c0_2 = arith.constant 0 : index
    %c0_3 = arith.constant 0 : index
    %2 = vector.load %arg1[%c0_1, %c0_2, %c0_3] : memref<8x2x32xf32, #tpu.memory_space<vmem>>, vector<8x2x32xf32>
    %3 = vector.broadcast %1 : vector<8x1x32xf32> to vector<8x2x32xf32>
    %4 = arith.addf %2, %3 : vector<8x2x32xf32>
    %c0_4 = arith.constant 0 : index
    %c0_5 = arith.constant 0 : index
    %c0_6 = arith.constant 0 : index
    %5 = vector.load %arg3[%c0_4, %c0_5, %c0_6] : memref<8x2x32xf32, #tpu.memory_space<vmem>>, vector<8x2x32xf32>
    tpu.vector_store %arg3[%c0_4, %c0_5, %c0_6], %4 {strides = array<i32>} : memref<8x2x32xf32, #tpu.memory_space<vmem>>, vector<8x2x32xf32>,
    return
  }
  func.func @transform_0(%arg0: i32) -> (i32, i32, i32) {
    %c0_i32 = arith.constant 0 : i32
    %c0_i32_0 = arith.constant 0 : i32
    %c0_i32_1 = arith.constant 0 : i32
    return %arg0, %c0_i32, %c0_i32_0 : i32, i32, i32
  }
  func.func @transform_1(%arg0: i32) -> (i32, i32) {
    %c0_i32 = arith.constant 0 : i32
    %c0_i32_0 = arith.constant 0 : i32
    return %arg0, %c0_i32 : i32, i32
  }
  func.func @transform_2(%arg0: i32) -> (i32, i32, i32) {
    %c0_i32 = arith.constant 0 : i32
    %c0_i32_0 = arith.constant 0 : i32
    %c0_i32_1 = arith.constant 0 : i32
    return %arg0, %c0_i32, %c0_i32_0 : i32, i32, i32
  }
}

</mosaic_0001>

<llo_original>
// kernel: tpu_custom_call.1
$region0: #{tpu_custom_call.1}
  #allocation0 [shape = 'u32[]', space=smem, size = 0x4, offset = 0x4, fixed_abs, tag = 'smem constant byte address 0x4 - core index']
  #allocation1 [shape = 'u32[144,128]{1,0:T(1,128)}', space=vmem, size = 0x12000, scoped, tag = 'internal scratch']
  %s0 = inlined_call_operand.hbm [shape: f32[8,2,32], index: 0, kind: input, shape index: {}, may-alias: {0,2}]
  %s1 = inlined_call_operand.vmem [shape: f32[40,32], index: 1, kind: input, shape index: {}]
  %s2 = inlined_call_operand.hbm [shape: f32[8,2,32], index: 2, kind: output, shape index: {}, may-alias: {0,2}]
  %s3 = sld [smem:[#allocation0]]
  $region22: #{tpu_custom_call.1} parent=0
    _
  %s5 = ssub.s32 1, %s3
  %s6 = scalar_select 0, %s5, %s3
  $region1: #{tpu_custom_call.1} parent=0
    #allocation2 [shape = 'u8[8192]{0}', space=vmem, size = 0x2000, scoped, tag = 'input window, operand 0, single buffered']
    #allocation3 [shape = 's32[1]{0}', space=sflag, size = 0x4, scoped, tag = 'scoped memory for tpu_custom_call.1']
    #allocation4 [shape = 's32[1]{0}', space=sflag, size = 0x4, scoped, tag = 'scoped memory for tpu_custom_call.1']
    #allocation5 [shape = 'u8[8192]{0}', space=vmem, size = 0x2000, scoped, tag = 'output window, operand 0, single buffered']
    %7 = vsyncpa [#allocation3], 0
    %8 = vsyncpa [#allocation4], 0
    // Predicated region
    $region2: #{tpu_custom_call.1} parent=1 // pred_check
      _
    $region3: #{tpu_custom_call.1} parent=1 // pred_check_branch
      %10 = sbr.rel (0) target = $region5
    $region4: #{tpu_custom_call.1} parent=1 // pred_region
      %s12 = ssub.s32 256, 256
      %13 = vsyncadd [#allocation3], %s12
      %s14 = sshll.u32 [#allocation2], 4
      %s15 = int_to_ptr.vmem [resolvable:$true] %s14
      %20 = dma.hbm_to_vmem [thread:$0]  %s0, 256, %s15, [#allocation3], 32, 32, 2
    $region5: #{tpu_custom_call.1} parent=1 // pred_fallthru
      _
    // Predicated region
    $region6: #{tpu_custom_call.1} parent=1 // pred_check
      _
    $region7: #{tpu_custom_call.1} parent=1 // pred_check_branch
      %22 = sbr.rel (0) target = $region9
    $region8: #{tpu_custom_call.1} parent=1 // pred_region
      _
    $region9: #{tpu_custom_call.1} parent=1 // pred_fallthru
      _
    // Predicated region
    $region10: #{tpu_custom_call.1} parent=1 // pred_check
      _
    $region11: #{tpu_custom_call.1} parent=1 // pred_check_branch
      %24 = sbr.rel (0) target = $region13
    $region12: #{tpu_custom_call.1} parent=1 // pred_region
      %25 = dma.done [#allocation3], 256
    $region13: #{tpu_custom_call.1} parent=1 // pred_fallthru
      _
    %v26 = vld [vmem:[%s1] sm:$0xff]
    %v28 = vcombine.high %v26, %v26
    %v30 = vunpack.c.l.s4 1966171168
    %v31 = vunpack.c.0.s8 %v30
    %v32 = vlaneseq
    %v33 = vshrl.u32 %v32, 7
    %v34 = vsub.s32 %v31, %v33
    %v35 = vrot.slane %v26, %v34
    %v37 = vunpack.c.l.s4 1966171168
    %v38 = vunpack.c.0.s8 %v37
    %v39 = vlaneseq
    %v40 = vshrl.u32 %v39, 7
    %v41 = vsub.s32 %v38, %v40
    %v42 = vrot.slane %v28, %v41
    %v43 = vcombine.high %v35, %v35
    %v44 = vcombine.high %v42, %v42
    %v46 = vunpack.c.l.s4 1966171168
    %v47 = vunpack.c.0.s8 %v46
    %v48 = vlaneseq
    %v49 = vshrl.u32 %v48, 7
    %v50 = vsub.s32 %v47, %v49
    %v51 = vrot.slane %v35, %v50
    %v53 = vunpack.c.l.s4 1966171168
    %v54 = vunpack.c.0.s8 %v53
    %v55 = vlaneseq
    %v56 = vshrl.u32 %v55, 7
    %v57 = vsub.s32 %v54, %v56
    %v58 = vrot.slane %v42, %v57
    %v60 = vunpack.c.l.s4 1966171168
    %v61 = vunpack.c.0.s8 %v60
    %v62 = vlaneseq
    %v63 = vshrl.u32 %v62, 7
    %v64 = vsub.s32 %v61, %v63
    %v65 = vrot.slane %v43, %v64
    %v67 = vunpack.c.l.s4 1966171168
    %v68 = vunpack.c.0.s8 %v67
    %v69 = vlaneseq
    %v70 = vshrl.u32 %v69, 7
    %v71 = vsub.s32 %v68, %v70
    %v72 = vrot.slane %v44, %v71
    %v73 = vcombine.high %v51, %v51
    %v74 = vcombine.high %v58, %v58
    %v75 = vcombine.high %v65, %v65
    %v76 = vcombine.high %v72, %v72
    %v77 = vld [vmem:[#allocation2] sm:$0x3]
    %v78 = vld [vmem:[#allocation2 + $0x2] sm:$0x3]
    %v79 = vld [vmem:[#allocation2 + $0x4] sm:$0x3]
    %v80 = vld [vmem:[#allocation2 + $0x6] sm:$0x3]
    %v81 = vld [vmem:[#allocation2 + $0x8] sm:$0x3]
    %v82 = vld [vmem:[#allocation2 + $0xa] sm:$0x3]
    %v83 = vld [vmem:[#allocation2 + $0xc] sm:$0x3]
    %v84 = vld [vmem:[#allocation2 + $0xe] sm:$0x3]
    %v85 = vlaneseq
    %v86 = vshrl.u32 %v85, 7
    %v87 = vsub.s32 0, %v86
    %v88 = vrot.slane %v51, %v87
    %v89 = vlaneseq
    %v90 = vshrl.u32 %v89, 7
    %v91 = vsub.s32 0, %v90
    %v92 = vrot.slane %v65, %v91
    %v93 = vlaneseq
    %v94 = vshrl.u32 %v93, 7
    %v95 = vsub.s32 0, %v94
    %v96 = vrot.slane %v73, %v95
    %v97 = vlaneseq
    %v98 = vshrl.u32 %v97, 7
    %v99 = vsub.s32 0, %v98
    %v100 = vrot.slane %v75, %v99
    %v101 = vlaneseq
    %v102 = vshrl.u32 %v101, 7
    %v103 = vsub.s32 0, %v102
    %v104 = vrot.slane %v58, %v103
    %v105 = vlaneseq
    %v106 = vshrl.u32 %v105, 7
    %v107 = vsub.s32 0, %v106
    %v108 = vrot.slane %v72, %v107
    %v109 = vlaneseq
    %v110 = vshrl.u32 %v109, 7
    %v111 = vsub.s32 0, %v110
    %v112 = vrot.slane %v74, %v111
    %v113 = vlaneseq
    %v114 = vshrl.u32 %v113, 7
    %v115 = vsub.s32 0, %v114
    %v116 = vrot.slane %v76, %v115
    %v125 = vadd.f32 %v77, %v88
    %v126 = vadd.f32 %v78, %v92
    %v127 = vadd.f32 %v79, %v96
    %v128 = vadd.f32 %v80, %v100
    %v129 = vadd.f32 %v81, %v104
    %v130 = vadd.f32 %v82, %v108
    %v131 = vadd.f32 %v83, %v112
    %v132 = vadd.f32 %v84, %v116
    %vm133 = vcmask 254976
    %134 = vst.msk [vmem:[#allocation5] sm:$0x3] %vm133, %v125
    %135 = vst.msk [vmem:[#allocation5 + $0x2] sm:$0x3] %vm133, %v126
    %136 = vst.msk [vmem:[#allocation5 + $0x4] sm:$0x3] %vm133, %v127
    %137 = vst.msk [vmem:[#allocation5 + $0x6] sm:$0x3] %vm133, %v128
    %138 = vst.msk [vmem:[#allocation5 + $0x8] sm:$0x3] %vm133, %v129
    %139 = vst.msk [vmem:[#allocation5 + $0xa] sm:$0x3] %vm133, %v130
    %140 = vst.msk [vmem:[#allocation5 + $0xc] sm:$0x3] %vm133, %v131
    %141 = vst.msk [vmem:[#allocation5 + $0xe] sm:$0x3] %vm133, %v132
    // Predicated region
    $region14: #{tpu_custom_call.1} parent=1 // pred_check
      _
    $region15: #{tpu_custom_call.1} parent=1 // pred_check_branch
      %143 = sbr.rel (0) target = $region17
    $region16: #{tpu_custom_call.1} parent=1 // pred_region
      %s145 = ssub.s32 256, 256
      %146 = vsyncadd [#allocation4], %s145
      %s147 = sshll.u32 [#allocation5], 4
      %s148 = int_to_ptr.vmem [resolvable:$true] %s147
      %153 = dma.vmem_to_hbm [thread:$0]  %s148, 256, %s2, [#allocation4], 32, 32, 2
    $region17: #{tpu_custom_call.1} parent=1 // pred_fallthru
      _
    // Predicated region
    $region18: #{tpu_custom_call.1} parent=1 // pred_check
      _
    $region19: #{tpu_custom_call.1} parent=1 // pred_check_branch
      %155 = sbr.rel (0) target = $region21
    $region20: #{tpu_custom_call.1} parent=1 // pred_region
      %156 = dma.done [#allocation4], 256
    $region21: #{tpu_custom_call.1} parent=1 // pred_fallthru
      _
    %157 = vsyncpa [#allocation3], 1
    %158 = vsyncpa [#allocation4], 1

</llo_original>
